<compile_context>
chip_gen: v6e
topology: v6e:2x2x1
jax: 0.10.0
libtpu: 0.0.40
codegen_flags: <defaults>
</compile_context>

<pallas_src>
import jax
import jax.numpy as jnp
from jax.experimental import pallas as pl
from jax.experimental.pallas import tpu as pltpu

OUT_LANES = 128  # lane-dense output width (true output is the first 2 columns)


def _round_up(x, m):
    return ((x + m - 1) // m) * m


def _attack_kernel(
    xo_ref, xp_ref,                      # [TB, class_num] f32, [TB, 1] f32
    wo1_ref, bo1_ref,                    # Output_Component first layer
    wp1_ref, bp1_ref,                    # Prediction_Component first layer (VPU)
    wof_ref, wpf_ref, bf_ref,            # folded (Wo2@We1[:64]), (Wp2@We1[64:]), fused bias
    we2_ref, be2_ref,
    we3_ref, be3_ref,
    we4_ref, be4_ref,                    # We4 zero-padded to [64, 128]
    y_ref,                               # [TB, 128] f32 (only [:, :2] is meaningful)
):
    f32 = jnp.float32
    bf16 = jnp.bfloat16
    relu = lambda v: jnp.maximum(v, 0.0)

    def mm(a, w_ref):
        # bf16 operands, f32 accumulation on the MXU.
        return jnp.dot(a.astype(bf16), w_ref[...], preferred_element_type=f32)

    # ---- Component heads ----
    h_o = relu(mm(xo_ref[...], wo1_ref) + bo1_ref[...])            # [TB, 128]
    h_p = relu(xp_ref[...] * wp1_ref[...] + bp1_ref[...])          # [TB, 128]  (VPU, K=1)

    # ---- Encoder (Wo2/Wp2/bo2/bp2 folded into the first 256-wide layer) ----
    h = relu(mm(h_o, wof_ref) + mm(h_p, wpf_ref) + bf_ref[...])    # [TB, 256]
    h = relu(mm(h, we2_ref) + be2_ref[...])                        # [TB, 128]
    h = relu(mm(h, we3_ref) + be3_ref[...])                        # [TB, 64]
    y_ref[...] = (mm(h, we4_ref) + be4_ref[...]).astype(y_ref.dtype)  # [TB, 128]


def prepare_params(p):
    """Fold the ReLU-free Wo2/Wp2 -> We1 path, pad We4 lane-dense, cast matmul weights to bf16.

    Done once, outside the per-call path (exact algebra in f32, then a single bf16 cast)."""
    f32, bf16 = jnp.float32, jnp.bfloat16
    we1_o = p["we1"][:64].astype(f32)                               # [64, 256]
    we1_p = p["we1"][64:].astype(f32)                               # [64, 256]
    w_of = p["wo2"].astype(f32) @ we1_o                             # [128, 256]
    w_pf = p["wp2"].astype(f32) @ we1_p                             # [128, 256]
    b_f = (p["bo2"].astype(f32) @ we1_o
           + p["bp2"].astype(f32) @ we1_p
           + p["be1"].astype(f32))                                  # [1, 256]
    we4_pad = jnp.pad(p["we4"].astype(f32), ((0, 0), (0, OUT_LANES - p["we4"].shape[1])))
    be4_pad = jnp.pad(p["be4"].astype(f32), ((0, 0), (0, OUT_LANES - p["be4"].shape[1])))
    return dict(
        wo1=p["wo1"].astype(bf16), bo1=p["bo1"].astype(f32),
        wp1=p["wp1"].astype(f32), bp1=p["bp1"].astype(f32),         # K=1 layer stays on the VPU in f32
        w_of=w_of.astype(bf16), w_pf=w_pf.astype(bf16), b_f=b_f,
        we2=p["we2"].astype(bf16), be2=p["be2"].astype(f32),
        we3=p["we3"].astype(bf16), be3=p["be3"].astype(f32),
        we4=we4_pad.astype(bf16), be4=be4_pad,
    )


def _device_defaults():
    kind = jax.devices()[0].device_kind.lower()
    is_v7x = ("v7" in kind) or ("7x" in kind)
    if is_v7x:
        # v7x: 64 MiB physical VMEM -> smaller tile + limit; 2 TensorCores -> core-parallel grid.
        sem = getattr(pltpu, "CORE_PARALLEL", "parallel")
        return 2048, 32 * 1024 * 1024, (sem,)
    # v5e / v6e: 128 MiB physical VMEM, single TensorCore.
    return 4096, 64 * 1024 * 1024, ("parallel",)


def partial_attack_model(output, prediction, prep, *, block_rows=None, vmem_limit_bytes=None):
    """output: [B, class_num] f32, prediction: [B, 1] f32 -> [B, 2] f32."""
    B, class_num = output.shape
    f32 = jnp.float32
    output = output.astype(f32)
    prediction = prediction.astype(f32)

    dflt_rows, dflt_vmem, dim_sem = _device_defaults()
    if block_rows is None:
        block_rows = dflt_rows
    if vmem_limit_bytes is None:
        vmem_limit_bytes = dflt_vmem

    # Batch tile: multiple of 8 sublanes; capped by block_rows and by a rough VMEM budget
    # (double-buffered input/output tiles + f32/bf16 intermediates; weights are ~0.6 MiB).
    per_row_bytes = (2 * (class_num + 1) * 4          # double-buffered f32 input tiles
                     + 2 * OUT_LANES * 4              # double-buffered f32 output tile
                     + 832 * 4 + 832 * 2)             # live f32 + bf16 intermediates
    budget_rows = max(8, ((vmem_limit_bytes // 2) // per_row_bytes) // 8 * 8)
    tb = max(8, min(block_rows, budget_rows, _round_up(B, 8)))

    weights = (
        prep["wo1"], prep["bo1"], prep["wp1"], prep["bp1"],
        prep["w_of"], prep["w_pf"], prep["b_f"],
        prep["we2"], prep["be2"], prep["we3"], prep["be3"],
        prep["we4"], prep["be4"],
    )

    def const_spec(a):
        # Full-array block, same block every grid step -> stays VMEM-resident across steps.
        return pl.BlockSpec(a.shape, lambda i, n=a.ndim: (0,) * n)

    in_specs = [
        pl.BlockSpec((tb, class_num), lambda i: (i, 0)),
        pl.BlockSpec((tb, 1), lambda i: (i, 0)),
    ] + [const_spec(w) for w in weights]

    y = pl.pallas_call(
        _attack_kernel,
        grid=(pl.cdiv(B, tb),),
        out_shape=jax.ShapeDtypeStruct((B, OUT_LANES), f32),
        in_specs=in_specs,
        out_specs=pl.BlockSpec((tb, OUT_LANES), lambda i: (i, 0)),
        compiler_params=pltpu.CompilerParams(
            dimension_semantics=dim_sem,
            vmem_limit_bytes=vmem_limit_bytes,
        ),
    )(output, prediction, *weights)
    return y[:, :2]


def init_params(key, class_num):
    """Deterministic synthetic init (PyTorch-style uniform fan-in scaling); weights as [in, out]."""
    def linear_init(key, fan_in, fan_out):
        k_w, k_b = jax.random.split(key)
        bound = 1.0 / jnp.sqrt(jnp.float32(fan_in))
        w = jax.random.uniform(k_w, (fan_in, fan_out), jnp.float32, -bound, bound)
        b = jax.random.uniform(k_b, (1, fan_out), jnp.float32, -bound, bound)
        return w, b

    keys = jax.random.split(key, 8)
    params = {}
    params["wo1"], params["bo1"] = linear_init(keys[0], class_num, 128)
    params["wo2"], params["bo2"] = linear_init(keys[1], 128, 64)
    params["wp1"], params["bp1"] = linear_init(keys[2], 1, 128)
    params["wp2"], params["bp2"] = linear_init(keys[3], 128, 64)
    params["we1"], params["be1"] = linear_init(keys[4], 128, 256)
    params["we2"], params["be2"] = linear_init(keys[5], 256, 128)
    params["we3"], params["be3"] = linear_init(keys[6], 128, 64)
    params["we4"], params["be4"] = linear_init(keys[7], 64, 2)
    return params


def reference_forward(output, prediction, p):
    relu = lambda x: jnp.maximum(x, 0.0)
    o = relu(output @ p["wo1"] + p["bo1"]) @ p["wo2"] + p["bo2"]
    q = relu(prediction @ p["wp1"] + p["bp1"]) @ p["wp2"] + p["bp2"]
    h = jnp.concatenate([o, q], axis=1)
    h = relu(h @ p["we1"] + p["be1"])
    h = relu(h @ p["we2"] + p["be2"])
    h = relu(h @ p["we3"] + p["be3"])
    return h @ p["we4"] + p["be4"]


if __name__ == "__main__":
    class_num = 10
    batch = 8

    key = jax.random.PRNGKey(0)
    k_params, k_out, k_pred = jax.random.split(key, 3)

    params = init_params(k_params, class_num)
    prep = prepare_params(params)  # fold + bf16 cast once, outside the per-call path

    # "output" is a posterior-like vector over classes, "prediction" a scalar per row.
    logits = jax.random.normal(k_out, (batch, class_num), jnp.float32)
    output = jax.nn.softmax(logits, axis=-1)
    prediction = jax.random.uniform(k_pred, (batch, 1), jnp.float32)

    fwd = jax.jit(partial_attack_model)
    y = jax.block_until_ready(fwd(output, prediction, prep))
    y_ref = reference_forward(output, prediction, params)
    assert y.shape == (batch, 2)
    # bf16 MXU operands (f32 accumulation) -> relaxed tolerance vs the all-f32 reference.
    assert jnp.allclose(y, y_ref, atol=3e-2, rtol=3e-2), "mismatch vs reference"

    # Also sanity-check a batch that is not a multiple of the tile / 8.
    output2 = jax.nn.softmax(jax.random.normal(k_out, (13, class_num), jnp.float32), axis=-1)
    prediction2 = jax.random.uniform(k_pred, (13, 1), jnp.float32)
    y2 = jax.block_until_ready(partial_attack_model(output2, prediction2, prep))
    assert y2.shape == (13, 2)
    assert jnp.allclose(y2, reference_forward(output2, prediction2, params), atol=3e-2, rtol=3e-2)

    print("KERNEL_OK")
</pallas_src>

<mosaic_0001>
module attributes {stable_mosaic.version = 11 : i64} {
  func.func @_attack_kernel(%arg0: i32, %arg1: memref<8x10xf32, #tpu.memory_space<vmem>>, %arg2: memref<8x1xf32, #tpu.memory_space<vmem>>, %arg3: memref<10x128xbf16, #tpu.memory_space<vmem>>, %arg4: memref<1x128xf32, #tpu.memory_space<vmem>>, %arg5: memref<1x128xf32, #tpu.memory_space<vmem>>, %arg6: memref<1x128xf32, #tpu.memory_space<vmem>>, %arg7: memref<128x256xbf16, #tpu.memory_space<vmem>>, %arg8: memref<128x256xbf16, #tpu.memory_space<vmem>>, %arg9: memref<1x256xf32, #tpu.memory_space<vmem>>, %arg10: memref<256x128xbf16, #tpu.memory_space<vmem>>, %arg11: memref<1x128xf32, #tpu.memory_space<vmem>>, %arg12: memref<128x64xbf16, #tpu.memory_space<vmem>>, %arg13: memref<1x64xf32, #tpu.memory_space<vmem>>, %arg14: memref<64x128xbf16, #tpu.memory_space<vmem>>, %arg15: memref<1x128xf32, #tpu.memory_space<vmem>>, %arg16: memref<8x128xf32, #tpu.memory_space<vmem>>) attributes {dimension_semantics = [#tpu.dimension_semantics<parallel>], iteration_bounds = array<i64: 1>, scalar_prefetch = 0 : i64, scratch_operands = 0 : i64, tpu.core_type = #tpu.core_type<tc>, window_params = [{transform_indices = @transform_0, window_bounds = array<i64: 8, 10>}, {transform_indices = @transform_1, window_bounds = array<i64: 8, 1>}, {pipeline_mode = #tpu.pipeline_mode<synchronous>, transform_indices = @transform_2, window_bounds = array<i64: 10, 128>}, {pipeline_mode = #tpu.pipeline_mode<synchronous>, transform_indices = @transform_3, window_bounds = array<i64: 1, 128>}, {pipeline_mode = #tpu.pipeline_mode<synchronous>, transform_indices = @transform_4, window_bounds = array<i64: 1, 128>}, {pipeline_mode = #tpu.pipeline_mode<synchronous>, transform_indices = @transform_5, window_bounds = array<i64: 1, 128>}, {pipeline_mode = #tpu.pipeline_mode<synchronous>, transform_indices = @transform_6, window_bounds = array<i64: 128, 256>}, {pipeline_mode = #tpu.pipeline_mode<synchronous>, transform_indices = @transform_7, window_bounds = array<i64: 128, 256>}, {pipeline_mode = #tpu.pipeline_mode<synchronous>, transform_indices = @transform_8, window_bounds = array<i64: 1, 256>}, {pipeline_mode = #tpu.pipeline_mode<synchronous>, transform_indices = @transform_9, window_bounds = array<i64: 256, 128>}, {pipeline_mode = #tpu.pipeline_mode<synchronous>, transform_indices = @transform_10, window_bounds = array<i64: 1, 128>}, {pipeline_mode = #tpu.pipeline_mode<synchronous>, transform_indices = @transform_11, window_bounds = array<i64: 128, 64>}, {pipeline_mode = #tpu.pipeline_mode<synchronous>, transform_indices = @transform_12, window_bounds = array<i64: 1, 64>}, {pipeline_mode = #tpu.pipeline_mode<synchronous>, transform_indices = @transform_13, window_bounds = array<i64: 64, 128>}, {pipeline_mode = #tpu.pipeline_mode<synchronous>, transform_indices = @transform_14, window_bounds = array<i64: 1, 128>}, {transform_indices = @transform_15, window_bounds = array<i64: 8, 128>}]} {
    %c0 = arith.constant 0 : index
    %c0_0 = arith.constant 0 : index
    %0 = vector.load %arg1[%c0, %c0_0] : memref<8x10xf32, #tpu.memory_space<vmem>>, vector<8x10xf32>
    %1 = arith.truncf %0 : vector<8x10xf32> to vector<8x10xbf16>
    %c0_1 = arith.constant 0 : index
    %c0_2 = arith.constant 0 : index
    %2 = vector.load %arg3[%c0_1, %c0_2] : memref<10x128xbf16, #tpu.memory_space<vmem>>, vector<10x128xbf16>
    %cst = arith.constant dense<0.000000e+00> : vector<8x128xf32>
    %3 = tpu.matmul %1, %2, %cst {dimension_numbers = #tpu.dot_dimension_numbers<[1], [0], [0], [1], [0, 0, 1, 1], [], []>} : vector<8x10xbf16>, vector<10x128xbf16>, vector<8x128xf32> -> vector<8x128xf32>
    %c0_3 = arith.constant 0 : index
    %c0_4 = arith.constant 0 : index
    %4 = vector.load %arg4[%c0_3, %c0_4] : memref<1x128xf32, #tpu.memory_space<vmem>>, vector<1x128xf32>
    %5 = vector.broadcast %4 : vector<1x128xf32> to vector<8x128xf32>
    %6 = arith.addf %3, %5 : vector<8x128xf32>
    %cst_5 = arith.constant 0.000000e+00 : f32
    %7 = vector.broadcast %cst_5 : f32 to vector<8x128xf32>
    %8 = arith.maximumf %6, %7 : vector<8x128xf32>
    %c0_6 = arith.constant 0 : index
    %c0_7 = arith.constant 0 : index
    %9 = vector.load %arg2[%c0_6, %c0_7] : memref<8x1xf32, #tpu.memory_space<vmem>>, vector<8x1xf32>
    %c0_8 = arith.constant 0 : index
    %c0_9 = arith.constant 0 : index
    %10 = vector.load %arg5[%c0_8, %c0_9] : memref<1x128xf32, #tpu.memory_space<vmem>>, vector<1x128xf32>
    %11 = vector.broadcast %9 : vector<8x1xf32> to vector<8x128xf32>
    %12 = vector.broadcast %10 : vector<1x128xf32> to vector<8x128xf32>
    %13 = arith.mulf %11, %12 : vector<8x128xf32>
    %c0_10 = arith.constant 0 : index
    %c0_11 = arith.constant 0 : index
    %14 = vector.load %arg6[%c0_10, %c0_11] : memref<1x128xf32, #tpu.memory_space<vmem>>, vector<1x128xf32>
    %15 = vector.broadcast %14 : vector<1x128xf32> to vector<8x128xf32>
    %16 = arith.addf %13, %15 : vector<8x128xf32>
    %cst_12 = arith.constant 0.000000e+00 : f32
    %17 = vector.broadcast %cst_12 : f32 to vector<8x128xf32>
    %18 = arith.maximumf %16, %17 : vector<8x128xf32>
    %19 = arith.truncf %8 : vector<8x128xf32> to vector<8x128xbf16>
    %c0_13 = arith.constant 0 : index
    %c0_14 = arith.constant 0 : index
    %20 = vector.load %arg7[%c0_13, %c0_14] : memref<128x256xbf16, #tpu.memory_space<vmem>>, vector<128x256xbf16>
    %cst_15 = arith.constant dense<0.000000e+00> : vector<8x256xf32>
    %21 = tpu.matmul %19, %20, %cst_15 {dimension_numbers = #tpu.dot_dimension_numbers<[1], [0], [0], [1], [0, 0, 1, 1], [], []>} : vector<8x128xbf16>, vector<128x256xbf16>, vector<8x256xf32> -> vector<8x256xf32>
    %22 = arith.truncf %18 : vector<8x128xf32> to vector<8x128xbf16>
    %c0_16 = arith.constant 0 : index
    %c0_17 = arith.constant 0 : index
    %23 = vector.load %arg8[%c0_16, %c0_17] : memref<128x256xbf16, #tpu.memory_space<vmem>>, vector<128x256xbf16>
    %cst_18 = arith.constant dense<0.000000e+00> : vector<8x256xf32>
    %24 = tpu.matmul %22, %23, %cst_18 {dimension_numbers = #tpu.dot_dimension_numbers<[1], [0], [0], [1], [0, 0, 1, 1], [], []>} : vector<8x128xbf16>, vector<128x256xbf16>, vector<8x256xf32> -> vector<8x256xf32>
    %25 = arith.addf %21, %24 : vector<8x256xf32>
    %c0_19 = arith.constant 0 : index
    %c0_20 = arith.constant 0 : index
    %26 = vector.load %arg9[%c0_19, %c0_20] : memref<1x256xf32, #tpu.memory_space<vmem>>, vector<1x256xf32>
    %27 = vector.broadcast %26 : vector<1x256xf32> to vector<8x256xf32>
    %28 = arith.addf %25, %27 : vector<8x256xf32>
    %cst_21 = arith.constant 0.000000e+00 : f32
    %29 = vector.broadcast %cst_21 : f32 to vector<8x256xf32>
    %30 = arith.maximumf %28, %29 : vector<8x256xf32>
    %31 = arith.truncf %30 : vector<8x256xf32> to vector<8x256xbf16>
    %c0_22 = arith.constant 0 : index
    %c0_23 = arith.constant 0 : index
    %32 = vector.load %arg10[%c0_22, %c0_23] : memref<256x128xbf16, #tpu.memory_space<vmem>>, vector<256x128xbf16>
    %cst_24 = arith.constant dense<0.000000e+00> : vector<8x128xf32>
    %33 = tpu.matmul %31, %32, %cst_24 {dimension_numbers = #tpu.dot_dimension_numbers<[1], [0], [0], [1], [0, 0, 1, 1], [], []>} : vector<8x256xbf16>, vector<256x128xbf16>, vector<8x128xf32> -> vector<8x128xf32>
    %c0_25 = arith.constant 0 : index
    %c0_26 = arith.constant 0 : index
    %34 = vector.load %arg11[%c0_25, %c0_26] : memref<1x128xf32, #tpu.memory_space<vmem>>, vector<1x128xf32>
    %35 = vector.broadcast %34 : vector<1x128xf32> to vector<8x128xf32>
    %36 = arith.addf %33, %35 : vector<8x128xf32>
    %cst_27 = arith.constant 0.000000e+00 : f32
    %37 = vector.broadcast %cst_27 : f32 to vector<8x128xf32>
    %38 = arith.maximumf %36, %37 : vector<8x128xf32>
    %39 = arith.truncf %38 : vector<8x128xf32> to vector<8x128xbf16>
    %c0_28 = arith.constant 0 : index
    %c0_29 = arith.constant 0 : index
    %40 = vector.load %arg12[%c0_28, %c0_29] : memref<128x64xbf16, #tpu.memory_space<vmem>>, vector<128x64xbf16>
    %cst_30 = arith.constant dense<0.000000e+00> : vector<8x64xf32>
    %41 = tpu.matmul %39, %40, %cst_30 {dimension_numbers = #tpu.dot_dimension_numbers<[1], [0], [0], [1], [0, 0, 1, 1], [], []>} : vector<8x128xbf16>, vector<128x64xbf16>, vector<8x64xf32> -> vector<8x64xf32>
    %c0_31 = arith.constant 0 : index
    %c0_32 = arith.constant 0 : index
    %42 = vector.load %arg13[%c0_31, %c0_32] : memref<1x64xf32, #tpu.memory_space<vmem>>, vector<1x64xf32>
    %43 = vector.broadcast %42 : vector<1x64xf32> to vector<8x64xf32>
    %44 = arith.addf %41, %43 : vector<8x64xf32>
    %cst_33 = arith.constant 0.000000e+00 : f32
    %45 = vector.broadcast %cst_33 : f32 to vector<8x64xf32>
    %46 = arith.maximumf %44, %45 : vector<8x64xf32>
    %47 = arith.truncf %46 : vector<8x64xf32> to vector<8x64xbf16>
    %c0_34 = arith.constant 0 : index
    %c0_35 = arith.constant 0 : index
    %48 = vector.load %arg14[%c0_34, %c0_35] : memref<64x128xbf16, #tpu.memory_space<vmem>>, vector<64x128xbf16>
    %cst_36 = arith.constant dense<0.000000e+00> : vector<8x128xf32>
    %49 = tpu.matmul %47, %48, %cst_36 {dimension_numbers = #tpu.dot_dimension_numbers<[1], [0], [0], [1], [0, 0, 1, 1], [], []>} : vector<8x64xbf16>, vector<64x128xbf16>, vector<8x128xf32> -> vector<8x128xf32>
    %c0_37 = arith.constant 0 : index
    %c0_38 = arith.constant 0 : index
    %50 = vector.load %arg15[%c0_37, %c0_38] : memref<1x128xf32, #tpu.memory_space<vmem>>, vector<1x128xf32>
    %51 = vector.broadcast %50 : vector<1x128xf32> to vector<8x128xf32>
    %52 = arith.addf %49, %51 : vector<8x128xf32>
    %c0_39 = arith.constant 0 : index
    %c0_40 = arith.constant 0 : index
    %53 = vector.load %arg16[%c0_39, %c0_40] : memref<8x128xf32, #tpu.memory_space<vmem>>, vector<8x128xf32>
    tpu.vector_store %arg16[%c0_39, %c0_40], %52 {strides = array<i32>} : memref<8x128xf32, #tpu.memory_space<vmem>>, vector<8x128xf32>,
    return
  }
  func.func @transform_0(%arg0: i32) -> (i32, i32) {
    %c0_i32 = arith.constant 0 : i32
    %c0_i32_0 = arith.constant 0 : i32
    return %arg0, %c0_i32 : i32, i32
  }
  func.func @transform_1(%arg0: i32) -> (i32, i32) {
    %c0_i32 = arith.constant 0 : i32
    %c0_i32_0 = arith.constant 0 : i32
    return %arg0, %c0_i32 : i32, i32
  }
  func.func @transform_2(%arg0: i32) -> (i32, i32) {
    %c0_i32 = arith.constant 0 : i32
    %c0_i32_0 = arith.constant 0 : i32
    %c0_i32_1 = arith.constant 0 : i32
    return %c0_i32, %c0_i32_0 : i32, i32
  }
  func.func @transform_3(%arg0: i32) -> (i32, i32) {
    %c0_i32 = arith.constant 0 : i32
    %c0_i32_0 = arith.constant 0 : i32
    %c0_i32_1 = arith.constant 0 : i32
    return %c0_i32, %c0_i32_0 : i32, i32
  }
  func.func @transform_4(%arg0: i32) -> (i32, i32) {
    %c0_i32 = arith.constant 0 : i32
    %c0_i32_0 = arith.constant 0 : i32
    %c0_i32_1 = arith.constant 0 : i32
    return %c0_i32, %c0_i32_0 : i32, i32
  }
  func.func @transform_5(%arg0: i32) -> (i32, i32) {
    %c0_i32 = arith.constant 0 : i32
    %c0_i32_0 = arith.constant 0 : i32
    %c0_i32_1 = arith.constant 0 : i32
    return %c0_i32, %c0_i32_0 : i32, i32
  }
  func.func @transform_6(%arg0: i32) -> (i32, i32) {
    %c0_i32 = arith.constant 0 : i32
    %c0_i32_0 = arith.constant 0 : i32
    %c0_i32_1 = arith.constant 0 : i32
    return %c0_i32, %c0_i32_0 : i32, i32
  }
  func.func @transform_7(%arg0: i32) -> (i32, i32) {
    %c0_i32 = arith.constant 0 : i32
    %c0_i32_0 = arith.constant 0 : i32
    %c0_i32_1 = arith.constant 0 : i32
    return %c0_i32, %c0_i32_0 : i32, i32
  }
  func.func @transform_8(%arg0: i32) -> (i32, i32) {
    %c0_i32 = arith.constant 0 : i32
    %c0_i32_0 = arith.constant 0 : i32
    %c0_i32_1 = arith.constant 0 : i32
    return %c0_i32, %c0_i32_0 : i32, i32
  }
  func.func @transform_9(%arg0: i32) -> (i32, i32) {
    %c0_i32 = arith.constant 0 : i32
    %c0_i32_0 = arith.constant 0 : i32
    %c0_i32_1 = arith.constant 0 : i32
    return %c0_i32, %c0_i32_0 : i32, i32
  }
  func.func @transform_10(%arg0: i32) -> (i32, i32) {
    %c0_i32 = arith.constant 0 : i32
    %c0_i32_0 = arith.constant 0 : i32
    %c0_i32_1 = arith.constant 0 : i32
    return %c0_i32, %c0_i32_0 : i32, i32
  }
  func.func @transform_11(%arg0: i32) -> (i32, i32) {
    %c0_i32 = arith.constant 0 : i32
    %c0_i32_0 = arith.constant 0 : i32
    %c0_i32_1 = arith.constant 0 : i32
    return %c0_i32, %c0_i32_0 : i32, i32
  }
  func.func @transform_12(%arg0: i32) -> (i32, i32) {
    %c0_i32 = arith.constant 0 : i32
    %c0_i32_0 = arith.constant 0 : i32
    %c0_i32_1 = arith.constant 0 : i32
    return %c0_i32, %c0_i32_0 : i32, i32
  }
  func.func @transform_13(%arg0: i32) -> (i32, i32) {
    %c0_i32 = arith.constant 0 : i32
    %c0_i32_0 = arith.constant 0 : i32
    %c0_i32_1 = arith.constant 0 : i32
    return %c0_i32, %c0_i32_0 : i32, i32
  }
  func.func @transform_14(%arg0: i32) -> (i32, i32) {
    %c0_i32 = arith.constant 0 : i32
    %c0_i32_0 = arith.constant 0 : i32
    %c0_i32_1 = arith.constant 0 : i32
    return %c0_i32, %c0_i32_0 : i32, i32
  }
  func.func @transform_15(%arg0: i32) -> (i32, i32) {
    %c0_i32 = arith.constant 0 : i32
    %c0_i32_0 = arith.constant 0 : i32
    return %arg0, %c0_i32 : i32, i32
  }
}

</mosaic_0001>

<llo_original>
// kernel: partial_attack_model.1
$region0: #{partial_attack_model.1}
  #allocation0 [shape = 'u32[]', space=smem, size = 0x4, offset = 0x4, fixed_abs, tag = 'smem constant byte address 0x4 - core index']
  #allocation1 [shape = 'u32[144,128]{1,0:T(1,128)}', space=vmem, size = 0x12000, scoped, tag = 'internal scratch']
  %s0 = inlined_call_operand.vmem [shape: f32[8,10], index: 0, kind: input, shape index: {}]
  %s1 = inlined_call_operand.vmem [shape: f32[8,1], index: 1, kind: input, shape index: {}]
  %s2 = inlined_call_operand.vmem [shape: bf16[10,128], index: 2, kind: input, shape index: {}]
  %s3 = inlined_call_operand.vmem [shape: f32[1,128], index: 3, kind: input, shape index: {}]
  %s4 = inlined_call_operand.vmem [shape: f32[1,128], index: 4, kind: input, shape index: {}]
  %s5 = inlined_call_operand.vmem [shape: f32[1,128], index: 5, kind: input, shape index: {}]
  %s6 = inlined_call_operand.hbm [shape: bf16[128,256], index: 6, kind: input, shape index: {}]
  %s7 = inlined_call_operand.hbm [shape: bf16[128,256], index: 7, kind: input, shape index: {}]
  %s8 = inlined_call_operand.vmem [shape: f32[1,256], index: 8, kind: input, shape index: {}]
  %s9 = inlined_call_operand.hbm [shape: bf16[256,128], index: 9, kind: input, shape index: {}]
  %s10 = inlined_call_operand.vmem [shape: f32[1,128], index: 10, kind: input, shape index: {}]
  %s11 = inlined_call_operand.vmem [shape: bf16[128,64], index: 11, kind: input, shape index: {}]
  %s12 = inlined_call_operand.vmem [shape: f32[1,64], index: 12, kind: input, shape index: {}]
  %s13 = inlined_call_operand.vmem [shape: bf16[64,128], index: 13, kind: input, shape index: {}]
  %s14 = inlined_call_operand.vmem [shape: f32[1,128], index: 14, kind: input, shape index: {}]
  %s15 = inlined_call_operand.vmem [shape: f32[8,128], index: 15, kind: output, shape index: {}]
  %s16 = sld [smem:[#allocation0]]
  $region82: #{partial_attack_model.1} parent=0
    _
  %s18 = ssub.s32 1, %s16
  %s19 = scalar_select 0, %s18, %s16
  $region1: #{partial_attack_model.1} parent=0
    #allocation2 [shape = 'u8[65536]{0}', space=vmem, size = 0x10000, scoped, tag = 'input window, operand 6, single buffered']
    #allocation3 [shape = 's32[1]{0}', space=sflag, size = 0x4, scoped, tag = 'scoped memory for partial_attack_model.1']
    #allocation4 [shape = 'u8[65536]{0}', space=vmem, size = 0x10000, scoped, tag = 'input window, operand 7, single buffered']
    #allocation5 [shape = 's32[1]{0}', space=sflag, size = 0x4, scoped, tag = 'scoped memory for partial_attack_model.1']
    #allocation6 [shape = 'u8[65536]{0}', space=vmem, size = 0x10000, scoped, tag = 'input window, operand 9, single buffered']
    %20 = vsyncpa [#allocation3], 0
    %21 = vsyncpa [#allocation5], 0
    // Predicated region
    $region2: #{partial_attack_model.1} parent=1 // pred_check
      _
    $region3: #{partial_attack_model.1} parent=1 // pred_check_branch
      %23 = sbr.rel (0) target = $region5
    $region4: #{partial_attack_model.1} parent=1 // pred_region
      _
    $region5: #{partial_attack_model.1} parent=1 // pred_fallthru
      _
    // Predicated region
    $region6: #{partial_attack_model.1} parent=1 // pred_check
      _
    $region7: #{partial_attack_model.1} parent=1 // pred_check_branch
      %25 = sbr.rel (0) target = $region9
    $region8: #{partial_attack_model.1} parent=1 // pred_region
      _
    $region9: #{partial_attack_model.1} parent=1 // pred_fallthru
      _
    // Predicated region
    $region10: #{partial_attack_model.1} parent=1 // pred_check
      _
    $region11: #{partial_attack_model.1} parent=1 // pred_check_branch
      %27 = sbr.rel (0) target = $region13
    $region12: #{partial_attack_model.1} parent=1 // pred_region
      _
    $region13: #{partial_attack_model.1} parent=1 // pred_fallthru
      _
    // Predicated region
    $region14: #{partial_attack_model.1} parent=1 // pred_check
      _
    $region15: #{partial_attack_model.1} parent=1 // pred_check_branch
      %29 = sbr.rel (0) target = $region17
    $region16: #{partial_attack_model.1} parent=1 // pred_region
      _
    $region17: #{partial_attack_model.1} parent=1 // pred_fallthru
      _
    // Predicated region
    $region18: #{partial_attack_model.1} parent=1 // pred_check
      _
    $region19: #{partial_attack_model.1} parent=1 // pred_check_branch
      %31 = sbr.rel (0) target = $region21
    $region20: #{partial_attack_model.1} parent=1 // pred_region
      _
    $region21: #{partial_attack_model.1} parent=1 // pred_fallthru
      _
    // Predicated region
    $region22: #{partial_attack_model.1} parent=1 // pred_check
      _
    $region23: #{partial_attack_model.1} parent=1 // pred_check_branch
      %33 = sbr.rel (0) target = $region25
    $region24: #{partial_attack_model.1} parent=1 // pred_region
      _
    $region25: #{partial_attack_model.1} parent=1 // pred_fallthru
      _
    // Predicated region
    $region26: #{partial_attack_model.1} parent=1 // pred_check
      _
    $region27: #{partial_attack_model.1} parent=1 // pred_check_branch
      %35 = sbr.rel (0) target = $region29
    $region28: #{partial_attack_model.1} parent=1 // pred_region
      %s37 = ssub.s32 2048, 2048
      %38 = vsyncadd [#allocation3], %s37
      %s39 = sshll.u32 [#allocation2], 4
      %s40 = int_to_ptr.vmem [resolvable:$true] %s39
      %45 = dma.hbm_to_vmem [thread:$0]  %s6, 2048, %s40, [#allocation3], 128, 128, 8
    $region29: #{partial_attack_model.1} parent=1 // pred_fallthru
      _
    // Predicated region
    $region30: #{partial_attack_model.1} parent=1 // pred_check
      _
    $region31: #{partial_attack_model.1} parent=1 // pred_check_branch
      %47 = sbr.rel (0) target = $region33
    $region32: #{partial_attack_model.1} parent=1 // pred_region
      %s49 = ssub.s32 2048, 2048
      %50 = vsyncadd [#allocation5], %s49
      %s51 = sshll.u32 [#allocation4], 4
      %s52 = int_to_ptr.vmem [resolvable:$true] %s51
      %57 = dma.hbm_to_vmem [thread:$0]  %s7, 2048, %s52, [#allocation5], 128, 128, 8
    $region33: #{partial_attack_model.1} parent=1 // pred_fallthru
      _
    // Predicated region
    $region34: #{partial_attack_model.1} parent=1 // pred_check
      _
    $region35: #{partial_attack_model.1} parent=1 // pred_check_branch
      %59 = sbr.rel (0) target = $region37
    $region36: #{partial_attack_model.1} parent=1 // pred_region
      _
    $region37: #{partial_attack_model.1} parent=1 // pred_fallthru
      _
    // Predicated region
    $region38: #{partial_attack_model.1} parent=1 // pred_check
      _
    $region39: #{partial_attack_model.1} parent=1 // pred_check_branch
      %61 = sbr.rel (0) target = $region41
    $region40: #{partial_attack_model.1} parent=1 // pred_region
      %s63 = ssub.s32 2048, 2048
      %64 = vsyncadd [#allocation5], %s63
      %s65 = sshll.u32 [#allocation6], 4
      %s66 = int_to_ptr.vmem [resolvable:$true] %s65
      %71 = dma.hbm_to_vmem [thread:$0]  %s9, 2048, %s66, [#allocation5], 64, 64, 4
    $region41: #{partial_attack_model.1} parent=1 // pred_fallthru
      _
    // Predicated region
    $region42: #{partial_attack_model.1} parent=1 // pred_check
      _
    $region43: #{partial_attack_model.1} parent=1 // pred_check_branch
      %73 = sbr.rel (0) target = $region45
    $region44: #{partial_attack_model.1} parent=1 // pred_region
      _
    $region45: #{partial_attack_model.1} parent=1 // pred_fallthru
      _
    // Predicated region
    $region46: #{partial_attack_model.1} parent=1 // pred_check
      _
    $region47: #{partial_attack_model.1} parent=1 // pred_check_branch
      %75 = sbr.rel (0) target = $region49
    $region48: #{partial_attack_model.1} parent=1 // pred_region
      _
    $region49: #{partial_attack_model.1} parent=1 // pred_fallthru
      _
    // Predicated region
    $region50: #{partial_attack_model.1} parent=1 // pred_check
      _
    $region51: #{partial_attack_model.1} parent=1 // pred_check_branch
      %77 = sbr.rel (0) target = $region53
    $region52: #{partial_attack_model.1} parent=1 // pred_region
      _
    $region53: #{partial_attack_model.1} parent=1 // pred_fallthru
      _
    // Predicated region
    $region54: #{partial_attack_model.1} parent=1 // pred_check
      _
    $region55: #{partial_attack_model.1} parent=1 // pred_check_branch
      %79 = sbr.rel (0) target = $region57
    $region56: #{partial_attack_model.1} parent=1 // pred_region
      _
    $region57: #{partial_attack_model.1} parent=1 // pred_fallthru
      _
    // Predicated region
    $region58: #{partial_attack_model.1} parent=1 // pred_check
      _
    $region59: #{partial_attack_model.1} parent=1 // pred_check_branch
      %81 = sbr.rel (0) target = $region61
    $region60: #{partial_attack_model.1} parent=1 // pred_region
      _
    $region61: #{partial_attack_model.1} parent=1 // pred_fallthru
      _
    // Predicated region
    $region62: #{partial_attack_model.1} parent=1 // pred_check
      _
    $region63: #{partial_attack_model.1} parent=1 // pred_check_branch
      %83 = sbr.rel (0) target = $region65
    $region64: #{partial_attack_model.1} parent=1 // pred_region
      %84 = dma.done [#allocation3], 2048
    $region65: #{partial_attack_model.1} parent=1 // pred_fallthru
      _
    // Predicated region
    $region66: #{partial_attack_model.1} parent=1 // pred_check
      _
    $region67: #{partial_attack_model.1} parent=1 // pred_check_branch
      %86 = sbr.rel (0) target = $region69
    $region68: #{partial_attack_model.1} parent=1 // pred_region
      %87 = dma.done [#allocation5], 2048
    $region69: #{partial_attack_model.1} parent=1 // pred_fallthru
      _
    // Predicated region
    $region70: #{partial_attack_model.1} parent=1 // pred_check
      _
    $region71: #{partial_attack_model.1} parent=1 // pred_check_branch
      %89 = sbr.rel (0) target = $region73
    $region72: #{partial_attack_model.1} parent=1 // pred_region
      %90 = dma.done [#allocation5], 2048
    $region73: #{partial_attack_model.1} parent=1 // pred_fallthru
      _
    %v92 = vld [vmem:[%s0] sm:$0xff]
    %v93 = vpack.c.bf16 %v92, %v92
    %v94 = vld [vmem:[%s2] sm:$0xf]
    %v95 = vld [vmem:[%s2 + $0x4] sm:$0x1]
    %v96 = vld [vmem:[%s3] sm:$0x1]
    %v98 = vlaneseq
    %v99 = vshrl.u32 %v98, 7
    %v100 = vsub.s32 0, %v99
    %v101 = vrot.slane %v96, %v100
    %v105 = vunpack.c.l.b16 %v94
    %v106 = vunpack.c.l.b16 %v95
    %v107 = vpack.c.b16 %v106, %v105
    %vm108 = vcmask 80896
    %v110 = vsel %vm108, %v93, 0
    %vm112 = vcmask 1044480
    %v114 = vsel %vm112, %v107, 0
    %116 = vmatprep.subr.bf16.mxu0 0
    %117 = vmatpush1.bf16.msra.mxu0 0
    %118 = vmatprep.subr.bf16.mxu0 0
    %119 = vmatpush1.bf16.msra.mxu0 0
    %120 = vmatprep.subr.bf16.mxu0 0
    %121 = vmatpush1.bf16.msra.mxu0 0
    %122 = vmatprep.subr.bf16.mxu0 0
    %123 = vmatpush1.bf16.msra.mxu0 0
    %124 = vmatprep.subr.bf16.mxu0 0
    %125 = vmatpush1.bf16.msra.mxu0 0
    %126 = vmatprep.subr.bf16.mxu0 0
    %127 = vmatpush1.bf16.msra.mxu0 0
    %128 = vmatprep.subr.bf16.mxu0 0
    %129 = vmatpush1.bf16.msra.mxu0 0
    %130 = vmatprep.subr.bf16.mxu0 0
    %131 = vmatpush1.bf16.msra.mxu0 %v114
    %132 = vmatprep.subr.bf16.mxu0 0
    %133 = vmatpush2.bf16.msra.mxu0 0
    %134 = vmatprep.subr.bf16.mxu0 0
    %135 = vmatpush2.bf16.msra.mxu0 0
    %136 = vmatprep.subr.bf16.mxu0 0
    %137 = vmatpush2.bf16.msra.mxu0 0
    %138 = vmatprep.subr.bf16.mxu0 0
    %139 = vmatpush2.bf16.msra.mxu0 0
    %140 = vmatprep.subr.bf16.mxu0 0
    %141 = vmatpush2.bf16.msra.mxu0 0
    %142 = vmatprep.subr.bf16.mxu0 0
    %143 = vmatpush2.bf16.msra.mxu0 0
    %144 = vmatprep.subr.bf16.mxu0 0
    %145 = vmatpush2.bf16.msra.mxu0 0
    %146 = vmatprep.subr.bf16.mxu0 0
    %147 = vmatpush2.bf16.msra.mxu0 0
    %148 = vmatprep.mubr.bf16.mxu0 0
    %149 = vmatmul.mubr.bf16.gmra.mxu0 %v110
    %v150 = vpop.f32.mrf.mxu0
    %v151 = vadd.f32 %v101, %v150
    %v152 = vpop.f32.mrf.mxu0
    %v153 = vpop.f32.mrf.mxu0
    %v154 = vpop.f32.mrf.mxu0
    %155 = vdwg.mxu0
    %v156 = vmax.f32 %v151, 0.0
    %v157 = vld [vmem:[%s1] sm:$0xff]
    %v158 = vld [vmem:[%s4] sm:$0x1]
    %160 = vset.pattern.permute.xlu0 0
    %161 = vperm.xlu0 %160, %v157
    %v162 = vpop.permute.xlu0 %161
    %v165 = vlaneseq
    %v166 = vshrl.u32 %v165, 7
    %v167 = vsub.s32 0, %v166
    %v168 = vrot.slane %v158, %v167
    %v170 = vmul.f32 %v162, %v168
    %v171 = vld [vmem:[%s5] sm:$0x1]
    %v173 = vlaneseq
    %v174 = vshrl.u32 %v173, 7
    %v175 = vsub.s32 0, %v174
    %v176 = vrot.slane %v171, %v175
    %v178 = vadd.f32 %v170, %v176
    %v179 = vmax.f32 %v178, 0.0
    %v180 = vpack.c.bf16 %v156, %v156
    %v181 = vld [vmem:[#allocation2] sm:$0xff]
    %v182 = vld [vmem:[#allocation2 + $0x8] sm:$0xff]
    %v183 = vld [vmem:[#allocation2 + $0x10] sm:$0xff]
    %v184 = vld [vmem:[#allocation2 + $0x18] sm:$0xff]
    %v185 = vld [vmem:[#allocation2 + $0x20] sm:$0xff]
    %v186 = vld [vmem:[#allocation2 + $0x28] sm:$0xff]
    %v187 = vld [vmem:[#allocation2 + $0x30] sm:$0xff]
    %v188 = vld [vmem:[#allocation2 + $0x38] sm:$0xff]
    %v189 = vld [vmem:[#allocation2 + $0x40] sm:$0xff]
    %v190 = vld [vmem:[#allocation2 + $0x48] sm:$0xff]
    %v191 = vld [vmem:[#allocation2 + $0x50] sm:$0xff]
    %v192 = vld [vmem:[#allocation2 + $0x58] sm:$0xff]
    %v193 = vld [vmem:[#allocation2 + $0x60] sm:$0xff]
    %v194 = vld [vmem:[#allocation2 + $0x68] sm:$0xff]
    %v195 = vld [vmem:[#allocation2 + $0x70] sm:$0xff]
    %v196 = vld [vmem:[#allocation2 + $0x78] sm:$0xff]
    %v197 = vpack.c.bf16 %v179, %v179
    %v198 = vld [vmem:[#allocation4] sm:$0xff]
    %v199 = vld [vmem:[#allocation4 + $0x8] sm:$0xff]
    %v200 = vld [vmem:[#allocation4 + $0x10] sm:$0xff]
    %v201 = vld [vmem:[#allocation4 + $0x18] sm:$0xff]
    %v202 = vld [vmem:[#allocation4 + $0x20] sm:$0xff]
    %v203 = vld [vmem:[#allocation4 + $0x28] sm:$0xff]
    %v204 = vld [vmem:[#allocation4 + $0x30] sm:$0xff]
    %v205 = vld [vmem:[#allocation4 + $0x38] sm:$0xff]
    %v206 = vld [vmem:[#allocation4 + $0x40] sm:$0xff]
    %v207 = vld [vmem:[#allocation4 + $0x48] sm:$0xff]
    %v208 = vld [vmem:[#allocation4 + $0x50] sm:$0xff]
    %v209 = vld [vmem:[#allocation4 + $0x58] sm:$0xff]
    %v210 = vld [vmem:[#allocation4 + $0x60] sm:$0xff]
    %v211 = vld [vmem:[#allocation4 + $0x68] sm:$0xff]
    %v212 = vld [vmem:[#allocation4 + $0x70] sm:$0xff]
    %v213 = vld [vmem:[#allocation4 + $0x78] sm:$0xff]
    %v230 = vunpack.c.l.b16 %v198
    %v231 = vunpack.c.h.b16 %v198
    %v232 = vunpack.c.l.b16 %v199
    %v233 = vunpack.c.h.b16 %v199
    %v234 = vunpack.c.l.b16 %v200
    %v235 = vunpack.c.h.b16 %v200
    %v236 = vunpack.c.l.b16 %v201
    %v237 = vunpack.c.h.b16 %v201
    %v238 = vunpack.c.l.b16 %v202
    %v239 = vunpack.c.h.b16 %v202
    %v240 = vunpack.c.l.b16 %v203
    %v241 = vunpack.c.h.b16 %v203
    %v242 = vunpack.c.l.b16 %v204
    %v243 = vunpack.c.h.b16 %v204
    %v244 = vunpack.c.l.b16 %v205
    %v245 = vunpack.c.h.b16 %v205
    %v246 = vunpack.c.l.b16 %v206
    %v247 = vunpack.c.h.b16 %v206
    %v248 = vunpack.c.l.b16 %v207
    %v249 = vunpack.c.h.b16 %v207
    %v250 = vunpack.c.l.b16 %v208
    %v251 = vunpack.c.h.b16 %v208
    %v252 = vunpack.c.l.b16 %v209
    %v253 = vunpack.c.h.b16 %v209
    %v254 = vunpack.c.l.b16 %v210
    %v255 = vunpack.c.h.b16 %v210
    %v256 = vunpack.c.l.b16 %v211
    %v257 = vunpack.c.h.b16 %v211
    %v258 = vunpack.c.l.b16 %v212
    %v259 = vunpack.c.h.b16 %v212
    %v260 = vunpack.c.l.b16 %v213
    %v261 = vunpack.c.h.b16 %v213
    %v262 = vpack.c.b16 %v232, %v230
    %v263 = vpack.c.b16 %v233, %v231
    %v264 = vpack.c.b16 %v236, %v234
    %v265 = vpack.c.b16 %v237, %v235
    %v266 = vpack.c.b16 %v240, %v238
    %v267 = vpack.c.b16 %v241, %v239
    %v268 = vpack.c.b16 %v244, %v242
    %v269 = vpack.c.b16 %v245, %v243
    %v270 = vpack.c.b16 %v248, %v246
    %v271 = vpack.c.b16 %v249, %v247
    %v272 = vpack.c.b16 %v252, %v250
    %v273 = vpack.c.b16 %v253, %v251
    %v274 = vpack.c.b16 %v256, %v254
    %v275 = vpack.c.b16 %v257, %v255
    %v276 = vpack.c.b16 %v260, %v258
    %v277 = vpack.c.b16 %v261, %v259
    %294 = vmatprep.subr.bf16.mxu0 %v277
    %295 = vmatpush1.bf16.msra.mxu0 %v276
    %296 = vmatprep.subr.bf16.mxu0 %v275
    %297 = vmatpush1.bf16.msra.mxu0 %v274
    %298 = vmatprep.subr.bf16.mxu0 %v273
    %299 = vmatpush1.bf16.msra.mxu0 %v272
    %300 = vmatprep.subr.bf16.mxu0 %v271
    %301 = vmatpush1.bf16.msra.mxu0 %v270
    %302 = vmatprep.subr.bf16.mxu0 %v269
    %303 = vmatpush1.bf16.msra.mxu0 %v268
    %304 = vmatprep.subr.bf16.mxu0 %v267
    %305 = vmatpush1.bf16.msra.mxu0 %v266
    %306 = vmatprep.subr.bf16.mxu0 %v265
    %307 = vmatpush1.bf16.msra.mxu0 %v264
    %308 = vmatprep.subr.bf16.mxu0 %v263
    %309 = vmatpush1.bf16.msra.mxu0 %v262
    %310 = vmatprep.subr.bf16.mxu0 0
    %311 = vmatpush2.bf16.msra.mxu0 0
    %312 = vmatprep.subr.bf16.mxu0 0
    %313 = vmatpush2.bf16.msra.mxu0 0
    %314 = vmatprep.subr.bf16.mxu0 0
    %315 = vmatpush2.bf16.msra.mxu0 0
    %316 = vmatprep.subr.bf16.mxu0 0
    %317 = vmatpush2.bf16.msra.mxu0 0
    %318 = vmatprep.subr.bf16.mxu0 0
    %319 = vmatpush2.bf16.msra.mxu0 0
    %320 = vmatprep.subr.bf16.mxu0 0
    %321 = vmatpush2.bf16.msra.mxu0 0
    %322 = vmatprep.subr.bf16.mxu0 0
    %323 = vmatpush2.bf16.msra.mxu0 0
    %324 = vmatprep.subr.bf16.mxu0 0
    %325 = vmatpush2.bf16.msra.mxu0 0
    %326 = vmatprep.mubr.bf16.mxu0 0
    %327 = vmatmul.mubr.bf16.gmra.mxu0 %v197
    %v328 = vpop.f32.mrf.mxu0
    %v329 = vadd.f32 0.0, %v328
    %v330 = vpop.f32.mrf.mxu0
    %v331 = vadd.f32 0.0, %v330
    %v332 = vpop.f32.mrf.mxu0
    %v333 = vpop.f32.mrf.mxu0
    %334 = vdwg.mxu0
    %v351 = vunpack.c.l.b16 %v181
    %v352 = vunpack.c.h.b16 %v181
    %v353 = vunpack.c.l.b16 %v182
    %v354 = vunpack.c.h.b16 %v182
    %v355 = vunpack.c.l.b16 %v183
    %v356 = vunpack.c.h.b16 %v183
    %v357 = vunpack.c.l.b16 %v184
    %v358 = vunpack.c.h.b16 %v184
    %v359 = vunpack.c.l.b16 %v185
    %v360 = vunpack.c.h.b16 %v185
    %v361 = vunpack.c.l.b16 %v186
    %v362 = vunpack.c.h.b16 %v186
    %v363 = vunpack.c.l.b16 %v187
    %v364 = vunpack.c.h.b16 %v187
    %v365 = vunpack.c.l.b16 %v188
    %v366 = vunpack.c.h.b16 %v188
    %v367 = vunpack.c.l.b16 %v189
    %v368 = vunpack.c.h.b16 %v189
    %v369 = vunpack.c.l.b16 %v190
    %v370 = vunpack.c.h.b16 %v190
    %v371 = vunpack.c.l.b16 %v191
    %v372 = vunpack.c.h.b16 %v191
    %v373 = vunpack.c.l.b16 %v192
    %v374 = vunpack.c.h.b16 %v192
    %v375 = vunpack.c.l.b16 %v193
    %v376 = vunpack.c.h.b16 %v193
    %v377 = vunpack.c.l.b16 %v194
    %v378 = vunpack.c.h.b16 %v194
    %v379 = vunpack.c.l.b16 %v195
    %v380 = vunpack.c.h.b16 %v195
    %v381 = vunpack.c.l.b16 %v196
    %v382 = vunpack.c.h.b16 %v196
    %v383 = vpack.c.b16 %v353, %v351
    %v384 = vpack.c.b16 %v354, %v352
    %v385 = vpack.c.b16 %v357, %v355
    %v386 = vpack.c.b16 %v358, %v356
    %v387 = vpack.c.b16 %v361, %v359
    %v388 = vpack.c.b16 %v362, %v360
    %v389 = vpack.c.b16 %v365, %v363
    %v390 = vpack.c.b16 %v366, %v364
    %v391 = vpack.c.b16 %v369, %v367
    %v392 = vpack.c.b16 %v370, %v368
    %v393 = vpack.c.b16 %v373, %v371
    %v394 = vpack.c.b16 %v374, %v372
    %v395 = vpack.c.b16 %v377, %v375
    %v396 = vpack.c.b16 %v378, %v376
    %v397 = vpack.c.b16 %v381, %v379
    %v398 = vpack.c.b16 %v382, %v380
    %415 = vmatprep.subr.bf16.mxu0 %v398
    %416 = vmatpush1.bf16.msra.mxu0 %v397
    %417 = vmatprep.subr.bf16.mxu0 %v396
    %418 = vmatpush1.bf16.msra.mxu0 %v395
    %419 = vmatprep.subr.bf16.mxu0 %v394
    %420 = vmatpush1.bf16.msra.mxu0 %v393
    %421 = vmatprep.subr.bf16.mxu0 %v392
    %422 = vmatpush1.bf16.msra.mxu0 %v391
    %423 = vmatprep.subr.bf16.mxu0 %v390
    %424 = vmatpush1.bf16.msra.mxu0 %v389
    %425 = vmatprep.subr.bf16.mxu0 %v388
    %426 = vmatpush1.bf16.msra.mxu0 %v387
    %427 = vmatprep.subr.bf16.mxu0 %v386
    %428 = vmatpush1.bf16.msra.mxu0 %v385
    %429 = vmatprep.subr.bf16.mxu0 %v384
    %430 = vmatpush1.bf16.msra.mxu0 %v383
    %431 = vmatprep.subr.bf16.mxu0 0
    %432 = vmatpush2.bf16.msra.mxu0 0
    %433 = vmatprep.subr.bf16.mxu0 0
    %434 = vmatpush2.bf16.msra.mxu0 0
    %435 = vmatprep.subr.bf16.mxu0 0
    %436 = vmatpush2.bf16.msra.mxu0 0
    %437 = vmatprep.subr.bf16.mxu0 0
    %438 = vmatpush2.bf16.msra.mxu0 0
    %439 = vmatprep.subr.bf16.mxu0 0
    %440 = vmatpush2.bf16.msra.mxu0 0
    %441 = vmatprep.subr.bf16.mxu0 0
    %442 = vmatpush2.bf16.msra.mxu0 0
    %443 = vmatprep.subr.bf16.mxu0 0
    %444 = vmatpush2.bf16.msra.mxu0 0
    %445 = vmatprep.subr.bf16.mxu0 0
    %446 = vmatpush2.bf16.msra.mxu0 0
    %447 = vmatprep.mubr.bf16.mxu0 0
    %448 = vmatmul.mubr.bf16.gmra.mxu0 %v180
    %v449 = vpop.f32.mrf.mxu0
    %v450 = vadd.f32 %v329, %v449
    %v451 = vpop.f32.mrf.mxu0
    %v452 = vadd.f32 %v331, %v451
    %v453 = vpop.f32.mrf.mxu0
    %v454 = vpop.f32.mrf.mxu0
    %455 = vdwg.mxu0
    %v456 = vld [vmem:[%s8] sm:$0x3]
    %v458 = vlaneseq
    %v459 = vshrl.u32 %v458, 7
    %v460 = vsub.s32 0, %v459
    %v461 = vrot.slane %v456, %v460
    %v462 = vlaneseq
    %v463 = vshrl.u32 %v462, 7
    %v464 = vsub.s32 1, %v463
    %v465 = vrot.slane %v456, %v464
    %v468 = vadd.f32 %v450, %v461
    %v469 = vadd.f32 %v452, %v465
    %v470 = vmax.f32 %v468, 0.0
    %v471 = vmax.f32 %v469, 0.0
    %v472 = vpack.c.bf16 %v470, %v470
    %v473 = vpack.c.bf16 %v471, %v471
    %v474 = vld [vmem:[#allocation6] sm:$0xf]
    %v475 = vld [vmem:[#allocation6 + $0x4] sm:$0xf]
    %v476 = vld [vmem:[#allocation6 + $0x8] sm:$0xf]
    %v477 = vld [vmem:[#allocation6 + $0xc] sm:$0xf]
    %v478 = vld [vmem:[#allocation6 + $0x10] sm:$0xf]
    %v479 = vld [vmem:[#allocation6 + $0x14] sm:$0xf]
    %v480 = vld [vmem:[#allocation6 + $0x18] sm:$0xf]
    %v481 = vld [vmem:[#allocation6 + $0x1c] sm:$0xf]
    %v482 = vld [vmem:[#allocation6 + $0x20] sm:$0xf]
    %v483 = vld [vmem:[#allocation6 + $0x24] sm:$0xf]
    %v484 = vld [vmem:[#allocation6 + $0x28] sm:$0xf]
    %v485 = vld [vmem:[#allocation6 + $0x2c] sm:$0xf]
    %v486 = vld [vmem:[#allocation6 + $0x30] sm:$0xf]
    %v487 = vld [vmem:[#allocation6 + $0x34] sm:$0xf]
    %v488 = vld [vmem:[#allocation6 + $0x38] sm:$0xf]
    %v489 = vld [vmem:[#allocation6 + $0x3c] sm:$0xf]
    %v490 = vld [vmem:[#allocation6 + $0x40] sm:$0xf]
    %v491 = vld [vmem:[#allocation6 + $0x44] sm:$0xf]
    %v492 = vld [vmem:[#allocation6 + $0x48] sm:$0xf]
    %v493 = vld [vmem:[#allocation6 + $0x4c] sm:$0xf]
    %v494 = vld [vmem:[#allocation6 + $0x50] sm:$0xf]
    %v495 = vld [vmem:[#allocation6 + $0x54] sm:$0xf]
    %v496 = vld [vmem:[#allocation6 + $0x58] sm:$0xf]
    %v497 = vld [vmem:[#allocation6 + $0x5c] sm:$0xf]
    %v498 = vld [vmem:[#allocation6 + $0x60] sm:$0xf]
    %v499 = vld [vmem:[#allocation6 + $0x64] sm:$0xf]
    %v500 = vld [vmem:[#allocation6 + $0x68] sm:$0xf]
    %v501 = vld [vmem:[#allocation6 + $0x6c] sm:$0xf]
    %v502 = vld [vmem:[#allocation6 + $0x70] sm:$0xf]
    %v503 = vld [vmem:[#allocation6 + $0x74] sm:$0xf]
    %v504 = vld [vmem:[#allocation6 + $0x78] sm:$0xf]
    %v505 = vld [vmem:[#allocation6 + $0x7c] sm:$0xf]
    %v506 = vld [vmem:[%s10] sm:$0x1]
    %v508 = vlaneseq
    %v509 = vshrl.u32 %v508, 7
    %v510 = vsub.s32 0, %v509
    %v511 = vrot.slane %v506, %v510
    %v545 = vunpack.c.l.b16 %v474
    %v546 = vunpack.c.l.b16 %v475
    %v547 = vunpack.c.l.b16 %v476
    %v548 = vunpack.c.l.b16 %v477
    %v549 = vunpack.c.l.b16 %v478
    %v550 = vunpack.c.l.b16 %v479
    %v551 = vunpack.c.l.b16 %v480
    %v552 = vunpack.c.l.b16 %v481
    %v553 = vunpack.c.l.b16 %v482
    %v554 = vunpack.c.l.b16 %v483
    %v555 = vunpack.c.l.b16 %v484
    %v556 = vunpack.c.l.b16 %v485
    %v557 = vunpack.c.l.b16 %v486
    %v558 = vunpack.c.l.b16 %v487
    %v559 = vunpack.c.l.b16 %v488
    %v560 = vunpack.c.l.b16 %v489
    %v561 = vunpack.c.l.b16 %v490
    %v562 = vunpack.c.l.b16 %v491
    %v563 = vunpack.c.l.b16 %v492
    %v564 = vunpack.c.l.b16 %v493
    %v565 = vunpack.c.l.b16 %v494
    %v566 = vunpack.c.l.b16 %v495
    %v567 = vunpack.c.l.b16 %v496
    %v568 = vunpack.c.l.b16 %v497
    %v569 = vunpack.c.l.b16 %v498
    %v570 = vunpack.c.l.b16 %v499
    %v571 = vunpack.c.l.b16 %v500
    %v572 = vunpack.c.l.b16 %v501
    %v573 = vunpack.c.l.b16 %v502
    %v574 = vunpack.c.l.b16 %v503
    %v575 = vunpack.c.l.b16 %v504
    %v576 = vunpack.c.l.b16 %v505
    %v577 = vpack.c.b16 %v546, %v545
    %v578 = vpack.c.b16 %v548, %v547
    %v579 = vpack.c.b16 %v550, %v549
    %v580 = vpack.c.b16 %v552, %v551
    %v581 = vpack.c.b16 %v554, %v553
    %v582 = vpack.c.b16 %v556, %v555
    %v583 = vpack.c.b16 %v558, %v557
    %v584 = vpack.c.b16 %v560, %v559
    %v585 = vpack.c.b16 %v562, %v561
    %v586 = vpack.c.b16 %v564, %v563
    %v587 = vpack.c.b16 %v566, %v565
    %v588 = vpack.c.b16 %v568, %v567
    %v589 = vpack.c.b16 %v570, %v569
    %v590 = vpack.c.b16 %v572, %v571
    %v591 = vpack.c.b16 %v574, %v573
    %v592 = vpack.c.b16 %v576, %v575
    %609 = vmatprep.subr.bf16.mxu0 0
    %610 = vmatpush1.bf16.msra.mxu0 %v584
    %611 = vmatprep.subr.bf16.mxu0 0
    %612 = vmatpush1.bf16.msra.mxu0 %v583
    %613 = vmatprep.subr.bf16.mxu0 0
    %614 = vmatpush1.bf16.msra.mxu0 %v582
    %615 = vmatprep.subr.bf16.mxu0 0
    %616 = vmatpush1.bf16.msra.mxu0 %v581
    %617 = vmatprep.subr.bf16.mxu0 0
    %618 = vmatpush1.bf16.msra.mxu0 %v580
    %619 = vmatprep.subr.bf16.mxu0 0
    %620 = vmatpush1.bf16.msra.mxu0 %v579
    %621 = vmatprep.subr.bf16.mxu0 0
    %622 = vmatpush1.bf16.msra.mxu0 %v578
    %623 = vmatprep.subr.bf16.mxu0 0
    %624 = vmatpush1.bf16.msra.mxu0 %v577
    %625 = vmatprep.subr.bf16.mxu0 0
    %626 = vmatpush2.bf16.msra.mxu0 %v592
    %627 = vmatprep.subr.bf16.mxu0 0
    %628 = vmatpush2.bf16.msra.mxu0 %v591
    %629 = vmatprep.subr.bf16.mxu0 0
    %630 = vmatpush2.bf16.msra.mxu0 %v590
    %631 = vmatprep.subr.bf16.mxu0 0
    %632 = vmatpush2.bf16.msra.mxu0 %v589
    %633 = vmatprep.subr.bf16.mxu0 0
    %634 = vmatpush2.bf16.msra.mxu0 %v588
    %635 = vmatprep.subr.bf16.mxu0 0
    %636 = vmatpush2.bf16.msra.mxu0 %v587
    %637 = vmatprep.subr.bf16.mxu0 0
    %638 = vmatpush2.bf16.msra.mxu0 %v586
    %639 = vmatprep.subr.bf16.mxu0 0
    %640 = vmatpush2.bf16.msra.mxu0 %v585
    %641 = vmatprep.mubr.bf16.mxu0 %v473
    %642 = vmatmul.mubr.bf16.gmra.mxu0 %v472
    %v643 = vpop.f32.mrf.mxu0
    %v644 = vadd.f32 %v511, %v643
    %v645 = vpop.f32.mrf.mxu0
    %v646 = vpop.f32.mrf.mxu0
    %v647 = vpop.f32.mrf.mxu0
    %648 = vdwg.mxu0
    %v649 = vmax.f32 %v644, 0.0
    %v650 = vpack.c.bf16 %v649, %v649
    %v651 = vld [vmem:[%s11] sm:$0xf]
    %v652 = vld [vmem:[%s11 + $0x4] sm:$0xf]
    %v653 = vld [vmem:[%s11 + $0x8] sm:$0xf]
    %v654 = vld [vmem:[%s11 + $0xc] sm:$0xf]
    %v655 = vld [vmem:[%s11 + $0x10] sm:$0xf]
    %v656 = vld [vmem:[%s11 + $0x14] sm:$0xf]
    %v657 = vld [vmem:[%s11 + $0x18] sm:$0xf]
    %v658 = vld [vmem:[%s11 + $0x1c] sm:$0xf]
    %v659 = vld [vmem:[%s11 + $0x20] sm:$0xf]
    %v660 = vld [vmem:[%s11 + $0x24] sm:$0xf]
    %v661 = vld [vmem:[%s11 + $0x28] sm:$0xf]
    %v662 = vld [vmem:[%s11 + $0x2c] sm:$0xf]
    %v663 = vld [vmem:[%s11 + $0x30] sm:$0xf]
    %v664 = vld [vmem:[%s11 + $0x34] sm:$0xf]
    %v665 = vld [vmem:[%s11 + $0x38] sm:$0xf]
    %v666 = vld [vmem:[%s11 + $0x3c] sm:$0xf]
    %v667 = vld [vmem:[%s12] sm:$0x1]
    %v669 = vlaneseq
    %v670 = vshrl.u32 %v669, 7
    %v671 = vsub.s32 0, %v670
    %v672 = vrot.slane %v667, %v671
    %v690 = vunpack.c.l.b16 %v651
    %v691 = vunpack.c.l.b16 %v652
    %v692 = vunpack.c.l.b16 %v653
    %v693 = vunpack.c.l.b16 %v654
    %v694 = vunpack.c.l.b16 %v655
    %v695 = vunpack.c.l.b16 %v656
    %v696 = vunpack.c.l.b16 %v657
    %v697 = vunpack.c.l.b16 %v658
    %v698 = vunpack.c.l.b16 %v659
    %v699 = vunpack.c.l.b16 %v660
    %v700 = vunpack.c.l.b16 %v661
    %v701 = vunpack.c.l.b16 %v662
    %v702 = vunpack.c.l.b16 %v663
    %v703 = vunpack.c.l.b16 %v664
    %v704 = vunpack.c.l.b16 %v665
    %v705 = vunpack.c.l.b16 %v666
    %v706 = vpack.c.b16 %v691, %v690
    %v707 = vpack.c.b16 %v693, %v692
    %v708 = vpack.c.b16 %v695, %v694
    %v709 = vpack.c.b16 %v697, %v696
    %v710 = vpack.c.b16 %v699, %v698
    %v711 = vpack.c.b16 %v701, %v700
    %v712 = vpack.c.b16 %v703, %v702
    %v713 = vpack.c.b16 %v705, %v704
    %722 = vmatprep.subr.bf16.mxu0 0
    %723 = vmatpush1.bf16.msra.mxu0 %v713
    %724 = vmatprep.subr.bf16.mxu0 0
    %725 = vmatpush1.bf16.msra.mxu0 %v712
    %726 = vmatprep.subr.bf16.mxu0 0
    %727 = vmatpush1.bf16.msra.mxu0 %v711
    %728 = vmatprep.subr.bf16.mxu0 0
    %729 = vmatpush1.bf16.msra.mxu0 %v710
    %730 = vmatprep.subr.bf16.mxu0 0
    %731 = vmatpush1.bf16.msra.mxu0 %v709
    %732 = vmatprep.subr.bf16.mxu0 0
    %733 = vmatpush1.bf16.msra.mxu0 %v708
    %734 = vmatprep.subr.bf16.mxu0 0
    %735 = vmatpush1.bf16.msra.mxu0 %v707
    %736 = vmatprep.subr.bf16.mxu0 0
    %737 = vmatpush1.bf16.msra.mxu0 %v706
    %738 = vmatprep.subr.bf16.mxu0 0
    %739 = vmatpush2.bf16.msra.mxu0 0
    %740 = vmatprep.subr.bf16.mxu0 0
    %741 = vmatpush2.bf16.msra.mxu0 0
    %742 = vmatprep.subr.bf16.mxu0 0
    %743 = vmatpush2.bf16.msra.mxu0 0
    %744 = vmatprep.subr.bf16.mxu0 0
    %745 = vmatpush2.bf16.msra.mxu0 0
    %746 = vmatprep.subr.bf16.mxu0 0
    %747 = vmatpush2.bf16.msra.mxu0 0
    %748 = vmatprep.subr.bf16.mxu0 0
    %749 = vmatpush2.bf16.msra.mxu0 0
    %750 = vmatprep.subr.bf16.mxu0 0
    %751 = vmatpush2.bf16.msra.mxu0 0
    %752 = vmatprep.subr.bf16.mxu0 0
    %753 = vmatpush2.bf16.msra.mxu0 0
    %754 = vmatprep.mubr.bf16.mxu0 0
    %755 = vmatmul.mubr.bf16.gmra.mxu0 %v650
    %v756 = vpop.f32.mrf.mxu0
    %v757 = vadd.f32 %v672, %v756
    %v758 = vpop.f32.mrf.mxu0
    %v759 = vpop.f32.mrf.mxu0
    %v760 = vpop.f32.mrf.mxu0
    %761 = vdwg.mxu0
    %v762 = vmax.f32 %v757, 0.0
    %v763 = vpack.c.bf16 %v762, %v762
    %v764 = vld [vmem:[%s13] sm:$0xf]
    %v765 = vld [vmem:[%s13 + $0x4] sm:$0xf]
    %v766 = vld [vmem:[%s13 + $0x8] sm:$0xf]
    %v767 = vld [vmem:[%s13 + $0xc] sm:$0xf]
    %v768 = vld [vmem:[%s13 + $0x10] sm:$0xf]
    %v769 = vld [vmem:[%s13 + $0x14] sm:$0xf]
    %v770 = vld [vmem:[%s13 + $0x18] sm:$0xf]
    %v771 = vld [vmem:[%s13 + $0x1c] sm:$0xf]
    %v772 = vld [vmem:[%s14] sm:$0x1]
    %v774 = vlaneseq
    %v775 = vshrl.u32 %v774, 7
    %v776 = vsub.s32 0, %v775
    %v777 = vrot.slane %v772, %v776
    %v787 = vunpack.c.l.b16 %v764
    %v788 = vunpack.c.l.b16 %v765
    %v789 = vunpack.c.l.b16 %v766
    %v790 = vunpack.c.l.b16 %v767
    %v791 = vunpack.c.l.b16 %v768
    %v792 = vunpack.c.l.b16 %v769
    %v793 = vunpack.c.l.b16 %v770
    %v794 = vunpack.c.l.b16 %v771
    %v795 = vpack.c.b16 %v788, %v787
    %v796 = vpack.c.b16 %v790, %v789
    %v797 = vpack.c.b16 %v792, %v791
    %v798 = vpack.c.b16 %v794, %v793
    %vm803 = vcmask 523264
    %v805 = vsel %vm803, %v763, 0
    %807 = vmatprep.subr.bf16.mxu0 0
    %808 = vmatpush1.bf16.msra.mxu0 0
    %809 = vmatprep.subr.bf16.mxu0 0
    %810 = vmatpush1.bf16.msra.mxu0 0
    %811 = vmatprep.subr.bf16.mxu0 0
    %812 = vmatpush1.bf16.msra.mxu0 0
    %813 = vmatprep.subr.bf16.mxu0 0
    %814 = vmatpush1.bf16.msra.mxu0 0
    %815 = vmatprep.subr.bf16.mxu0 0
    %816 = vmatpush1.bf16.msra.mxu0 %v798
    %817 = vmatprep.subr.bf16.mxu0 0
    %818 = vmatpush1.bf16.msra.mxu0 %v797
    %819 = vmatprep.subr.bf16.mxu0 0
    %820 = vmatpush1.bf16.msra.mxu0 %v796
    %821 = vmatprep.subr.bf16.mxu0 0
    %822 = vmatpush1.bf16.msra.mxu0 %v795
    %823 = vmatprep.subr.bf16.mxu0 0
    %824 = vmatpush2.bf16.msra.mxu0 0
    %825 = vmatprep.subr.bf16.mxu0 0
    %826 = vmatpush2.bf16.msra.mxu0 0
    %827 = vmatprep.subr.bf16.mxu0 0
    %828 = vmatpush2.bf16.msra.mxu0 0
    %829 = vmatprep.subr.bf16.mxu0 0
    %830 = vmatpush2.bf16.msra.mxu0 0
    %831 = vmatprep.subr.bf16.mxu0 0
    %832 = vmatpush2.bf16.msra.mxu0 0
    %833 = vmatprep.subr.bf16.mxu0 0
    %834 = vmatpush2.bf16.msra.mxu0 0
    %835 = vmatprep.subr.bf16.mxu0 0
    %836 = vmatpush2.bf16.msra.mxu0 0
    %837 = vmatprep.subr.bf16.mxu0 0
    %838 = vmatpush2.bf16.msra.mxu0 0
    %839 = vmatprep.mubr.bf16.mxu0 0
    %840 = vmatmul.mubr.bf16.gmra.mxu0 %v805
    %v841 = vpop.f32.mrf.mxu0
    %v842 = vadd.f32 %v777, %v841
    %v843 = vpop.f32.mrf.mxu0
    %v844 = vpop.f32.mrf.mxu0
    %v845 = vpop.f32.mrf.mxu0
    %846 = vdwg.mxu0
    %847 = vst [vmem:[%s15] sm:$0xff] %v842
    // Predicated region
    $region74: #{partial_attack_model.1} parent=1 // pred_check
      _
    $region75: #{partial_attack_model.1} parent=1 // pred_check_branch
      %849 = sbr.rel (0) target = $region77
    $region76: #{partial_attack_model.1} parent=1 // pred_region
      _
    $region77: #{partial_attack_model.1} parent=1 // pred_fallthru
      _
    // Predicated region
    $region78: #{partial_attack_model.1} parent=1 // pred_check
      _
    $region79: #{partial_attack_model.1} parent=1 // pred_check_branch
      %851 = sbr.rel (0) target = $region81
    $region80: #{partial_attack_model.1} parent=1 // pred_region
      _
    $region81: #{partial_attack_model.1} parent=1 // pred_fallthru
      _
    %852 = vsyncpa [#allocation3], 1
    %853 = vsyncpa [#allocation5], 1

</llo_original>
